<compile_context>
chip_gen: v6e
topology: v6e:2x2x1
jax: 0.10.0
libtpu: 0.0.40
codegen_flags: <defaults>
</compile_context>

<pallas_src>
import functools

import numpy as np
import jax
import jax.numpy as jnp
from jax.experimental import pallas as pl
from jax.experimental.pallas import tpu as pltpu

POOL_K = 9
LANE = 128                      # lane padding granularity
SUBLANE = 8                     # channel-tile granularity
MAX_C_TILE = 512                # cap on rows per block
TILE_BUDGET_BYTES = 2 * 1024 * 1024   # budget for one (C_TILE, Wp) f32 slab
VMEM_LIMIT_BYTES = 48 * 1024 * 1024   # fits v7x's 64 MiB per-TC VMEM


def _round_up(n, m):
    return ((n + m - 1) // m) * m


def _multiscale_kernel(sh1_ref, sh2_ref, x_ref, out_ref, *, inv_k, wp,
                       shifts, in1, in2):
    """sh1/sh2: (1, Wp) int32 per-lane upsample shift tables; x: (CT, Wp) f32;
    out: (4, CT, Wp) f32 = [up(avg_s1), up(avg_s9), up(max_s1), up(max_s9)] + x."""
    x = x_ref[...]
    sh1 = sh1_ref[...]
    sh2 = sh2_ref[...]

    def lroll(v, k):                    # lroll(v, k)[j] == v[j + k]  (mod Wp)
        return pltpu.roll(v, (wp - k) % wp, axis=1)

    # Shared misaligned copies (used by both pool chains).
    x1 = lroll(x, 1)
    x8 = lroll(x, 8)

    def upsample(p):
        # Nearest upsample: up[i] = pool[i - shift[i]] with static per-lane shifts.
        # Only shifts that actually occur in the tables get a roll; the stride-9
        # pool (avg_s9[k] == avg_s1[9k]) is folded into sh2.
        u1 = p                          # shift == 0 lanes
        u2 = p
        for i, s in enumerate(shifts):
            r = pltpu.roll(p, s, axis=1)
            if in1[i]:
                u1 = jnp.where(sh1 == s, r, u1)
            if in2[i]:
                u2 = jnp.where(sh2 == s, r, u2)
        return u1, u2

    # ---- average branch (fully computed + stored before the max branch to
    # keep the live temporary set small) ----------------------------------
    s2 = x + x1
    s4 = s2 + lroll(s2, 2)
    s8 = s4 + lroll(s4, 4)
    a1 = (s8 + x8) * inv_k              # AvgPool1d(9, stride=1), valid lanes j < W-8
    a1u, a2u = upsample(a1)
    out_ref[0] = a1u + x
    out_ref[1] = a2u + x

    # ---- max branch ------------------------------------------------------
    t2 = jnp.maximum(x, x1)
    t4 = jnp.maximum(t2, lroll(t2, 2))
    t8 = jnp.maximum(t4, lroll(t4, 4))
    m1 = jnp.maximum(t8, x8)            # MaxPool1d(9, stride=1)
    m1u, m2u = upsample(m1)
    out_ref[2] = m1u + x
    out_ref[3] = m2u + x


def multiscale_forward(x):
    """x: (B, C, W) -> (B, 4*C, W) float32, matching MultiScale.forward (size=W)."""
    B, C, W = x.shape
    assert W >= POOL_K, f"MultiScale needs W >= {POOL_K}, got W={W}"
    W1 = W - (POOL_K - 1)                    # stride-1 pooled length
    L2 = (W - POOL_K) // POOL_K + 1          # stride-9 pooled length

    Wp = _round_up(W, LANE)

    # Channel tile: as many (multiple-of-8) rows as the per-slab VMEM budget allows.
    max_rows = max(SUBLANE, (TILE_BUDGET_BYTES // (Wp * 4)) // SUBLANE * SUBLANE)
    max_rows = min(max_rows, MAX_C_TILE)
    c_round = _round_up(C, SUBLANE)
    c_tile = c_round if c_round <= max_rows else max_rows
    Cp = _round_up(C, c_tile)

    # Static per-lane nearest-upsample shift tables (numpy, trace time).
    cols = np.arange(W)
    src1 = (cols * W1) // W                  # gather index into stride-1 pools
    src2 = POOL_K * ((cols * L2) // W)       # stride-9 pool expressed on stride-1 pool
    sh1 = np.zeros((1, Wp), np.int32)
    sh2 = np.zeros((1, Wp), np.int32)
    sh1[0, :W] = cols - src1
    sh2[0, :W] = cols - src2
    set1 = set(int(v) for v in sh1[0, :W]) - {0}
    set2 = set(int(v) for v in sh2[0, :W]) - {0}
    shifts = tuple(sorted(set1 | set2))      # distinct shifts only (<= 16)
    in1 = tuple(s in set1 for s in shifts)
    in2 = tuple(s in set2 for s in shifts)

    xw = x.astype(jnp.float32)
    needs_pad = (Cp != C) or (Wp != W)
    if needs_pad:
        xw = jnp.pad(xw, ((0, 0), (0, Cp - C), (0, Wp - W)))

    kernel = functools.partial(_multiscale_kernel, inv_k=float(1.0 / POOL_K),
                               wp=Wp, shifts=shifts, in1=in1, in2=in2)

    out = pl.pallas_call(
        kernel,
        out_shape=jax.ShapeDtypeStruct((B, 4, Cp, Wp), jnp.float32),
        grid=(B, Cp // c_tile),
        in_specs=[
            pl.BlockSpec((1, Wp), lambda b, c: (0, 0)),            # sh1 (broadcast)
            pl.BlockSpec((1, Wp), lambda b, c: (0, 0)),            # sh2 (broadcast)
            pl.BlockSpec((None, c_tile, Wp), lambda b, c: (b, c, 0)),
        ],
        out_specs=pl.BlockSpec((None, 4, c_tile, Wp), lambda b, c: (b, 0, c, 0)),
        compiler_params=pltpu.CompilerParams(
            dimension_semantics=("parallel", "parallel"),
            vmem_limit_bytes=VMEM_LIMIT_BYTES),
    )(jnp.asarray(sh1), jnp.asarray(sh2), xw)

    if needs_pad:
        out = out[:, :, :C, :W]
    # (B, 4, C, W) -> (B, 4*C, W) is a contiguous (free) reshape: branch-major
    # channel order matches torch.cat([avg1, avg2, max1, max2], dim=1).
    return out.reshape(B, 4 * C, W)


# ----------------------- numpy reference (torch semantics) -------------------
def _avg_pool1d(a, k, s):
    n = (a.shape[-1] - k) // s + 1
    return np.stack([a[..., i * s:i * s + k].mean(axis=-1) for i in range(n)], axis=-1)


def _max_pool1d(a, k, s):
    n = (a.shape[-1] - k) // s + 1
    return np.stack([a[..., i * s:i * s + k].max(axis=-1) for i in range(n)], axis=-1)


def _upsample_nearest(a, size):
    lin = a.shape[-1]
    idx = (np.arange(size) * lin) // size
    return a[..., idx]


def reference_forward(x):
    x = np.asarray(x, np.float32)
    W = x.shape[-1]
    a1 = _avg_pool1d(x, POOL_K, 1)
    a2 = _avg_pool1d(x, POOL_K, POOL_K)
    m1 = _max_pool1d(x, POOL_K, 1)
    m2 = _max_pool1d(x, POOL_K, POOL_K)
    outs = [_upsample_nearest(a1, W) + x, _upsample_nearest(a2, W) + x,
            _upsample_nearest(m1, W) + x, _upsample_nearest(m2, W) + x]
    return np.concatenate(outs, axis=1)                        # (B, 4C, W)


if __name__ == "__main__":
    B, C, W = 2, 4, 64
    key = jax.random.PRNGKey(0)
    x = jax.random.normal(key, (B, C, W), dtype=jnp.float32)

    out = jax.block_until_ready(multiscale_forward(x))

    ref = reference_forward(np.asarray(x))
    assert out.shape == (B, 4 * C, W), out.shape
    np.testing.assert_allclose(np.asarray(out), ref, rtol=1e-5, atol=1e-5)
    print("KERNEL_OK")
</pallas_src>

<mosaic_0001>
module attributes {stable_mosaic.version = 11 : i64} {
  func.func @_multiscale_kernel(%arg0: i32, %arg1: i32, %arg2: memref<1x128xi32, #tpu.memory_space<vmem>>, %arg3: memref<1x128xi32, #tpu.memory_space<vmem>>, %arg4: memref<1x8x128xf32, #tpu.memory_space<vmem>>, %arg5: memref<1x4x8x128xf32, #tpu.memory_space<vmem>>) attributes {dimension_semantics = [#tpu.dimension_semantics<parallel>, #tpu.dimension_semantics<parallel>], iteration_bounds = array<i64: 2, 1>, scalar_prefetch = 0 : i64, scratch_operands = 0 : i64, tpu.core_type = #tpu.core_type<tc>, window_params = [{pipeline_mode = #tpu.pipeline_mode<synchronous>, transform_indices = @transform_0, window_bounds = array<i64: 1, 128>}, {pipeline_mode = #tpu.pipeline_mode<synchronous>, transform_indices = @transform_1, window_bounds = array<i64: 1, 128>}, {transform_indices = @transform_2, window_bounds = array<i64: 1, 8, 128>}, {transform_indices = @transform_3, window_bounds = array<i64: 1, 4, 8, 128>}]} {
    %c0 = arith.constant 0 : index
    %c0_0 = arith.constant 0 : index
    %c0_1 = arith.constant 0 : index
    %0 = vector.load %arg4[%c0, %c0_0, %c0_1] : memref<1x8x128xf32, #tpu.memory_space<vmem>>, vector<1x8x128xf32>
    %1 = vector.shape_cast %0 : vector<1x8x128xf32> to vector<8x128xf32>
    %c0_2 = arith.constant 0 : index
    %c0_3 = arith.constant 0 : index
    %2 = vector.load %arg2[%c0_2, %c0_3] : memref<1x128xi32, #tpu.memory_space<vmem>>, vector<1x128xi32>
    %c0_4 = arith.constant 0 : index
    %c0_5 = arith.constant 0 : index
    %3 = vector.load %arg3[%c0_4, %c0_5] : memref<1x128xi32, #tpu.memory_space<vmem>>, vector<1x128xi32>
    %c127_i32 = arith.constant 127 : i32
    %4 = tpu.dynamic_rotate %1 by %c127_i32 dim 1 : vector<8x128xf32>, i32 -> vector<8x128xf32>
    %c120_i32 = arith.constant 120 : i32
    %5 = tpu.dynamic_rotate %1 by %c120_i32 dim 1 : vector<8x128xf32>, i32 -> vector<8x128xf32>
    %6 = arith.addf %1, %4 : vector<8x128xf32>
    %c126_i32 = arith.constant 126 : i32
    %7 = tpu.dynamic_rotate %6 by %c126_i32 dim 1 : vector<8x128xf32>, i32 -> vector<8x128xf32>
    %8 = arith.addf %6, %7 : vector<8x128xf32>
    %c124_i32 = arith.constant 124 : i32
    %9 = tpu.dynamic_rotate %8 by %c124_i32 dim 1 : vector<8x128xf32>, i32 -> vector<8x128xf32>
    %10 = arith.addf %8, %9 : vector<8x128xf32>
    %11 = arith.addf %10, %5 : vector<8x128xf32>
    %cst = arith.constant 0.111111112 : f32
    %12 = vector.broadcast %cst : f32 to vector<8x128xf32>
    %13 = arith.mulf %11, %12 : vector<8x128xf32>
    %c1_i32 = arith.constant 1 : i32
    %14 = tpu.dynamic_rotate %13 by %c1_i32 dim 1 : vector<8x128xf32>, i32 -> vector<8x128xf32>
    %c1_i32_6 = arith.constant 1 : i32
    %15 = vector.broadcast %c1_i32_6 : i32 to vector<1x128xi32>
    %16 = arith.cmpi eq, %2, %15 : vector<1x128xi32>
    %17 = vector.shape_cast %16 : vector<1x128xi1> to vector<1x128xi1>
    %18 = vector.broadcast %17 : vector<1x128xi1> to vector<8x128xi1>
    %19 = arith.select %18, %14, %13 : vector<8x128xi1>, vector<8x128xf32>
    %c1_i32_7 = arith.constant 1 : i32
    %20 = vector.broadcast %c1_i32_7 : i32 to vector<1x128xi32>
    %21 = arith.cmpi eq, %3, %20 : vector<1x128xi32>
    %22 = vector.shape_cast %21 : vector<1x128xi1> to vector<1x128xi1>
    %23 = vector.broadcast %22 : vector<1x128xi1> to vector<8x128xi1>
    %24 = arith.select %23, %14, %13 : vector<8x128xi1>, vector<8x128xf32>
    %c2_i32 = arith.constant 2 : i32
    %25 = tpu.dynamic_rotate %13 by %c2_i32 dim 1 : vector<8x128xf32>, i32 -> vector<8x128xf32>
    %c2_i32_8 = arith.constant 2 : i32
    %26 = vector.broadcast %c2_i32_8 : i32 to vector<1x128xi32>
    %27 = arith.cmpi eq, %2, %26 : vector<1x128xi32>
    %28 = vector.shape_cast %27 : vector<1x128xi1> to vector<1x128xi1>
    %29 = vector.broadcast %28 : vector<1x128xi1> to vector<8x128xi1>
    %30 = arith.select %29, %25, %19 : vector<8x128xi1>, vector<8x128xf32>
    %c2_i32_9 = arith.constant 2 : i32
    %31 = vector.broadcast %c2_i32_9 : i32 to vector<1x128xi32>
    %32 = arith.cmpi eq, %3, %31 : vector<1x128xi32>
    %33 = vector.shape_cast %32 : vector<1x128xi1> to vector<1x128xi1>
    %34 = vector.broadcast %33 : vector<1x128xi1> to vector<8x128xi1>
    %35 = arith.select %34, %25, %24 : vector<8x128xi1>, vector<8x128xf32>
    %c3_i32 = arith.constant 3 : i32
    %36 = tpu.dynamic_rotate %13 by %c3_i32 dim 1 : vector<8x128xf32>, i32 -> vector<8x128xf32>
    %c3_i32_10 = arith.constant 3 : i32
    %37 = vector.broadcast %c3_i32_10 : i32 to vector<1x128xi32>
    %38 = arith.cmpi eq, %2, %37 : vector<1x128xi32>
    %39 = vector.shape_cast %38 : vector<1x128xi1> to vector<1x128xi1>
    %40 = vector.broadcast %39 : vector<1x128xi1> to vector<8x128xi1>
    %41 = arith.select %40, %36, %30 : vector<8x128xi1>, vector<8x128xf32>
    %c3_i32_11 = arith.constant 3 : i32
    %42 = vector.broadcast %c3_i32_11 : i32 to vector<1x128xi32>
    %43 = arith.cmpi eq, %3, %42 : vector<1x128xi32>
    %44 = vector.shape_cast %43 : vector<1x128xi1> to vector<1x128xi1>
    %45 = vector.broadcast %44 : vector<1x128xi1> to vector<8x128xi1>
    %46 = arith.select %45, %36, %35 : vector<8x128xi1>, vector<8x128xf32>
    %c4_i32 = arith.constant 4 : i32
    %47 = tpu.dynamic_rotate %13 by %c4_i32 dim 1 : vector<8x128xf32>, i32 -> vector<8x128xf32>
    %c4_i32_12 = arith.constant 4 : i32
    %48 = vector.broadcast %c4_i32_12 : i32 to vector<1x128xi32>
    %49 = arith.cmpi eq, %2, %48 : vector<1x128xi32>
    %50 = vector.shape_cast %49 : vector<1x128xi1> to vector<1x128xi1>
    %51 = vector.broadcast %50 : vector<1x128xi1> to vector<8x128xi1>
    %52 = arith.select %51, %47, %41 : vector<8x128xi1>, vector<8x128xf32>
    %c4_i32_13 = arith.constant 4 : i32
    %53 = vector.broadcast %c4_i32_13 : i32 to vector<1x128xi32>
    %54 = arith.cmpi eq, %3, %53 : vector<1x128xi32>
    %55 = vector.shape_cast %54 : vector<1x128xi1> to vector<1x128xi1>
    %56 = vector.broadcast %55 : vector<1x128xi1> to vector<8x128xi1>
    %57 = arith.select %56, %47, %46 : vector<8x128xi1>, vector<8x128xf32>
    %c5_i32 = arith.constant 5 : i32
    %58 = tpu.dynamic_rotate %13 by %c5_i32 dim 1 : vector<8x128xf32>, i32 -> vector<8x128xf32>
    %c5_i32_14 = arith.constant 5 : i32
    %59 = vector.broadcast %c5_i32_14 : i32 to vector<1x128xi32>
    %60 = arith.cmpi eq, %2, %59 : vector<1x128xi32>
    %61 = vector.shape_cast %60 : vector<1x128xi1> to vector<1x128xi1>
    %62 = vector.broadcast %61 : vector<1x128xi1> to vector<8x128xi1>
    %63 = arith.select %62, %58, %52 : vector<8x128xi1>, vector<8x128xf32>
    %c5_i32_15 = arith.constant 5 : i32
    %64 = vector.broadcast %c5_i32_15 : i32 to vector<1x128xi32>
    %65 = arith.cmpi eq, %3, %64 : vector<1x128xi32>
    %66 = vector.shape_cast %65 : vector<1x128xi1> to vector<1x128xi1>
    %67 = vector.broadcast %66 : vector<1x128xi1> to vector<8x128xi1>
    %68 = arith.select %67, %58, %57 : vector<8x128xi1>, vector<8x128xf32>
    %c6_i32 = arith.constant 6 : i32
    %69 = tpu.dynamic_rotate %13 by %c6_i32 dim 1 : vector<8x128xf32>, i32 -> vector<8x128xf32>
    %c6_i32_16 = arith.constant 6 : i32
    %70 = vector.broadcast %c6_i32_16 : i32 to vector<1x128xi32>
    %71 = arith.cmpi eq, %2, %70 : vector<1x128xi32>
    %72 = vector.shape_cast %71 : vector<1x128xi1> to vector<1x128xi1>
    %73 = vector.broadcast %72 : vector<1x128xi1> to vector<8x128xi1>
    %74 = arith.select %73, %69, %63 : vector<8x128xi1>, vector<8x128xf32>
    %c6_i32_17 = arith.constant 6 : i32
    %75 = vector.broadcast %c6_i32_17 : i32 to vector<1x128xi32>
    %76 = arith.cmpi eq, %3, %75 : vector<1x128xi32>
    %77 = vector.shape_cast %76 : vector<1x128xi1> to vector<1x128xi1>
    %78 = vector.broadcast %77 : vector<1x128xi1> to vector<8x128xi1>
    %79 = arith.select %78, %69, %68 : vector<8x128xi1>, vector<8x128xf32>
    %c7_i32 = arith.constant 7 : i32
    %80 = tpu.dynamic_rotate %13 by %c7_i32 dim 1 : vector<8x128xf32>, i32 -> vector<8x128xf32>
    %c7_i32_18 = arith.constant 7 : i32
    %81 = vector.broadcast %c7_i32_18 : i32 to vector<1x128xi32>
    %82 = arith.cmpi eq, %2, %81 : vector<1x128xi32>
    %83 = vector.shape_cast %82 : vector<1x128xi1> to vector<1x128xi1>
    %84 = vector.broadcast %83 : vector<1x128xi1> to vector<8x128xi1>
    %85 = arith.select %84, %80, %74 : vector<8x128xi1>, vector<8x128xf32>
    %c7_i32_19 = arith.constant 7 : i32
    %86 = vector.broadcast %c7_i32_19 : i32 to vector<1x128xi32>
    %87 = arith.cmpi eq, %3, %86 : vector<1x128xi32>
    %88 = vector.shape_cast %87 : vector<1x128xi1> to vector<1x128xi1>
    %89 = vector.broadcast %88 : vector<1x128xi1> to vector<8x128xi1>
    %90 = arith.select %89, %80, %79 : vector<8x128xi1>, vector<8x128xf32>
    %c8_i32 = arith.constant 8 : i32
    %91 = tpu.dynamic_rotate %13 by %c8_i32 dim 1 : vector<8x128xf32>, i32 -> vector<8x128xf32>
    %c8_i32_20 = arith.constant 8 : i32
    %92 = vector.broadcast %c8_i32_20 : i32 to vector<1x128xi32>
    %93 = arith.cmpi eq, %2, %92 : vector<1x128xi32>
    %94 = vector.shape_cast %93 : vector<1x128xi1> to vector<1x128xi1>
    %95 = vector.broadcast %94 : vector<1x128xi1> to vector<8x128xi1>
    %96 = arith.select %95, %91, %85 : vector<8x128xi1>, vector<8x128xf32>
    %c8_i32_21 = arith.constant 8 : i32
    %97 = vector.broadcast %c8_i32_21 : i32 to vector<1x128xi32>
    %98 = arith.cmpi eq, %3, %97 : vector<1x128xi32>
    %99 = vector.shape_cast %98 : vector<1x128xi1> to vector<1x128xi1>
    %100 = vector.broadcast %99 : vector<1x128xi1> to vector<8x128xi1>
    %101 = arith.select %100, %91, %90 : vector<8x128xi1>, vector<8x128xf32>
    %c9_i32 = arith.constant 9 : i32
    %102 = tpu.dynamic_rotate %13 by %c9_i32 dim 1 : vector<8x128xf32>, i32 -> vector<8x128xf32>
    %c9_i32_22 = arith.constant 9 : i32
    %103 = vector.broadcast %c9_i32_22 : i32 to vector<1x128xi32>
    %104 = arith.cmpi eq, %3, %103 : vector<1x128xi32>
    %105 = vector.shape_cast %104 : vector<1x128xi1> to vector<1x128xi1>
    %106 = vector.broadcast %105 : vector<1x128xi1> to vector<8x128xi1>
    %107 = arith.select %106, %102, %101 : vector<8x128xi1>, vector<8x128xf32>
    %108 = arith.addf %96, %1 : vector<8x128xf32>
    %c0_23 = arith.constant 0 : index
    %c0_24 = arith.constant 0 : index
    %c0_25 = arith.constant 0 : index
    %c0_26 = arith.constant 0 : index
    %109 = vector.load %arg5[%c0_23, %c0_24, %c0_25, %c0_26] : memref<1x4x8x128xf32, #tpu.memory_space<vmem>>, vector<1x1x8x128xf32>
    %110 = vector.shape_cast %109 : vector<1x1x8x128xf32> to vector<8x128xf32>
    %111 = vector.shape_cast %108 : vector<8x128xf32> to vector<1x1x8x128xf32>
    tpu.vector_store %arg5[%c0_23, %c0_24, %c0_25, %c0_26], %111 {strides = array<i32>} : memref<1x4x8x128xf32, #tpu.memory_space<vmem>>, vector<1x1x8x128xf32>,
    %112 = arith.addf %107, %1 : vector<8x128xf32>
    %c0_27 = arith.constant 0 : index
    %c1 = arith.constant 1 : index
    %c0_28 = arith.constant 0 : index
    %c0_29 = arith.constant 0 : index
    %113 = vector.load %arg5[%c0_27, %c1, %c0_28, %c0_29] : memref<1x4x8x128xf32, #tpu.memory_space<vmem>>, vector<1x1x8x128xf32>
    %114 = vector.shape_cast %113 : vector<1x1x8x128xf32> to vector<8x128xf32>
    %115 = vector.shape_cast %112 : vector<8x128xf32> to vector<1x1x8x128xf32>
    tpu.vector_store %arg5[%c0_27, %c1, %c0_28, %c0_29], %115 {strides = array<i32>} : memref<1x4x8x128xf32, #tpu.memory_space<vmem>>, vector<1x1x8x128xf32>,
    %116 = arith.maximumf %1, %4 : vector<8x128xf32>
    %c126_i32_30 = arith.constant 126 : i32
    %117 = tpu.dynamic_rotate %116 by %c126_i32_30 dim 1 : vector<8x128xf32>, i32 -> vector<8x128xf32>
    %118 = arith.maximumf %116, %117 : vector<8x128xf32>
    %c124_i32_31 = arith.constant 124 : i32
    %119 = tpu.dynamic_rotate %118 by %c124_i32_31 dim 1 : vector<8x128xf32>, i32 -> vector<8x128xf32>
    %120 = arith.maximumf %118, %119 : vector<8x128xf32>
    %121 = arith.maximumf %120, %5 : vector<8x128xf32>
    %c1_i32_32 = arith.constant 1 : i32
    %122 = tpu.dynamic_rotate %121 by %c1_i32_32 dim 1 : vector<8x128xf32>, i32 -> vector<8x128xf32>
    %c1_i32_33 = arith.constant 1 : i32
    %123 = vector.broadcast %c1_i32_33 : i32 to vector<1x128xi32>
    %124 = arith.cmpi eq, %2, %123 : vector<1x128xi32>
    %125 = vector.shape_cast %124 : vector<1x128xi1> to vector<1x128xi1>
    %126 = vector.broadcast %125 : vector<1x128xi1> to vector<8x128xi1>
    %127 = arith.select %126, %122, %121 : vector<8x128xi1>, vector<8x128xf32>
    %c1_i32_34 = arith.constant 1 : i32
    %128 = vector.broadcast %c1_i32_34 : i32 to vector<1x128xi32>
    %129 = arith.cmpi eq, %3, %128 : vector<1x128xi32>
    %130 = vector.shape_cast %129 : vector<1x128xi1> to vector<1x128xi1>
    %131 = vector.broadcast %130 : vector<1x128xi1> to vector<8x128xi1>
    %132 = arith.select %131, %122, %121 : vector<8x128xi1>, vector<8x128xf32>
    %c2_i32_35 = arith.constant 2 : i32
    %133 = tpu.dynamic_rotate %121 by %c2_i32_35 dim 1 : vector<8x128xf32>, i32 -> vector<8x128xf32>
    %c2_i32_36 = arith.constant 2 : i32
    %134 = vector.broadcast %c2_i32_36 : i32 to vector<1x128xi32>
    %135 = arith.cmpi eq, %2, %134 : vector<1x128xi32>
    %136 = vector.shape_cast %135 : vector<1x128xi1> to vector<1x128xi1>
    %137 = vector.broadcast %136 : vector<1x128xi1> to vector<8x128xi1>
    %138 = arith.select %137, %133, %127 : vector<8x128xi1>, vector<8x128xf32>
    %c2_i32_37 = arith.constant 2 : i32
    %139 = vector.broadcast %c2_i32_37 : i32 to vector<1x128xi32>
    %140 = arith.cmpi eq, %3, %139 : vector<1x128xi32>
    %141 = vector.shape_cast %140 : vector<1x128xi1> to vector<1x128xi1>
    %142 = vector.broadcast %141 : vector<1x128xi1> to vector<8x128xi1>
    %143 = arith.select %142, %133, %132 : vector<8x128xi1>, vector<8x128xf32>
    %c3_i32_38 = arith.constant 3 : i32
    %144 = tpu.dynamic_rotate %121 by %c3_i32_38 dim 1 : vector<8x128xf32>, i32 -> vector<8x128xf32>
    %c3_i32_39 = arith.constant 3 : i32
    %145 = vector.broadcast %c3_i32_39 : i32 to vector<1x128xi32>
    %146 = arith.cmpi eq, %2, %145 : vector<1x128xi32>
    %147 = vector.shape_cast %146 : vector<1x128xi1> to vector<1x128xi1>
    %148 = vector.broadcast %147 : vector<1x128xi1> to vector<8x128xi1>
    %149 = arith.select %148, %144, %138 : vector<8x128xi1>, vector<8x128xf32>
    %c3_i32_40 = arith.constant 3 : i32
    %150 = vector.broadcast %c3_i32_40 : i32 to vector<1x128xi32>
    %151 = arith.cmpi eq, %3, %150 : vector<1x128xi32>
    %152 = vector.shape_cast %151 : vector<1x128xi1> to vector<1x128xi1>
    %153 = vector.broadcast %152 : vector<1x128xi1> to vector<8x128xi1>
    %154 = arith.select %153, %144, %143 : vector<8x128xi1>, vector<8x128xf32>
    %c4_i32_41 = arith.constant 4 : i32
    %155 = tpu.dynamic_rotate %121 by %c4_i32_41 dim 1 : vector<8x128xf32>, i32 -> vector<8x128xf32>
    %c4_i32_42 = arith.constant 4 : i32
    %156 = vector.broadcast %c4_i32_42 : i32 to vector<1x128xi32>
    %157 = arith.cmpi eq, %2, %156 : vector<1x128xi32>
    %158 = vector.shape_cast %157 : vector<1x128xi1> to vector<1x128xi1>
    %159 = vector.broadcast %158 : vector<1x128xi1> to vector<8x128xi1>
    %160 = arith.select %159, %155, %149 : vector<8x128xi1>, vector<8x128xf32>
    %c4_i32_43 = arith.constant 4 : i32
    %161 = vector.broadcast %c4_i32_43 : i32 to vector<1x128xi32>
    %162 = arith.cmpi eq, %3, %161 : vector<1x128xi32>
    %163 = vector.shape_cast %162 : vector<1x128xi1> to vector<1x128xi1>
    %164 = vector.broadcast %163 : vector<1x128xi1> to vector<8x128xi1>
    %165 = arith.select %164, %155, %154 : vector<8x128xi1>, vector<8x128xf32>
    %c5_i32_44 = arith.constant 5 : i32
    %166 = tpu.dynamic_rotate %121 by %c5_i32_44 dim 1 : vector<8x128xf32>, i32 -> vector<8x128xf32>
    %c5_i32_45 = arith.constant 5 : i32
    %167 = vector.broadcast %c5_i32_45 : i32 to vector<1x128xi32>
    %168 = arith.cmpi eq, %2, %167 : vector<1x128xi32>
    %169 = vector.shape_cast %168 : vector<1x128xi1> to vector<1x128xi1>
    %170 = vector.broadcast %169 : vector<1x128xi1> to vector<8x128xi1>
    %171 = arith.select %170, %166, %160 : vector<8x128xi1>, vector<8x128xf32>
    %c5_i32_46 = arith.constant 5 : i32
    %172 = vector.broadcast %c5_i32_46 : i32 to vector<1x128xi32>
    %173 = arith.cmpi eq, %3, %172 : vector<1x128xi32>
    %174 = vector.shape_cast %173 : vector<1x128xi1> to vector<1x128xi1>
    %175 = vector.broadcast %174 : vector<1x128xi1> to vector<8x128xi1>
    %176 = arith.select %175, %166, %165 : vector<8x128xi1>, vector<8x128xf32>
    %c6_i32_47 = arith.constant 6 : i32
    %177 = tpu.dynamic_rotate %121 by %c6_i32_47 dim 1 : vector<8x128xf32>, i32 -> vector<8x128xf32>
    %c6_i32_48 = arith.constant 6 : i32
    %178 = vector.broadcast %c6_i32_48 : i32 to vector<1x128xi32>
    %179 = arith.cmpi eq, %2, %178 : vector<1x128xi32>
    %180 = vector.shape_cast %179 : vector<1x128xi1> to vector<1x128xi1>
    %181 = vector.broadcast %180 : vector<1x128xi1> to vector<8x128xi1>
    %182 = arith.select %181, %177, %171 : vector<8x128xi1>, vector<8x128xf32>
    %c6_i32_49 = arith.constant 6 : i32
    %183 = vector.broadcast %c6_i32_49 : i32 to vector<1x128xi32>
    %184 = arith.cmpi eq, %3, %183 : vector<1x128xi32>
    %185 = vector.shape_cast %184 : vector<1x128xi1> to vector<1x128xi1>
    %186 = vector.broadcast %185 : vector<1x128xi1> to vector<8x128xi1>
    %187 = arith.select %186, %177, %176 : vector<8x128xi1>, vector<8x128xf32>
    %c7_i32_50 = arith.constant 7 : i32
    %188 = tpu.dynamic_rotate %121 by %c7_i32_50 dim 1 : vector<8x128xf32>, i32 -> vector<8x128xf32>
    %c7_i32_51 = arith.constant 7 : i32
    %189 = vector.broadcast %c7_i32_51 : i32 to vector<1x128xi32>
    %190 = arith.cmpi eq, %2, %189 : vector<1x128xi32>
    %191 = vector.shape_cast %190 : vector<1x128xi1> to vector<1x128xi1>
    %192 = vector.broadcast %191 : vector<1x128xi1> to vector<8x128xi1>
    %193 = arith.select %192, %188, %182 : vector<8x128xi1>, vector<8x128xf32>
    %c7_i32_52 = arith.constant 7 : i32
    %194 = vector.broadcast %c7_i32_52 : i32 to vector<1x128xi32>
    %195 = arith.cmpi eq, %3, %194 : vector<1x128xi32>
    %196 = vector.shape_cast %195 : vector<1x128xi1> to vector<1x128xi1>
    %197 = vector.broadcast %196 : vector<1x128xi1> to vector<8x128xi1>
    %198 = arith.select %197, %188, %187 : vector<8x128xi1>, vector<8x128xf32>
    %c8_i32_53 = arith.constant 8 : i32
    %199 = tpu.dynamic_rotate %121 by %c8_i32_53 dim 1 : vector<8x128xf32>, i32 -> vector<8x128xf32>
    %c8_i32_54 = arith.constant 8 : i32
    %200 = vector.broadcast %c8_i32_54 : i32 to vector<1x128xi32>
    %201 = arith.cmpi eq, %2, %200 : vector<1x128xi32>
    %202 = vector.shape_cast %201 : vector<1x128xi1> to vector<1x128xi1>
    %203 = vector.broadcast %202 : vector<1x128xi1> to vector<8x128xi1>
    %204 = arith.select %203, %199, %193 : vector<8x128xi1>, vector<8x128xf32>
    %c8_i32_55 = arith.constant 8 : i32
    %205 = vector.broadcast %c8_i32_55 : i32 to vector<1x128xi32>
    %206 = arith.cmpi eq, %3, %205 : vector<1x128xi32>
    %207 = vector.shape_cast %206 : vector<1x128xi1> to vector<1x128xi1>
    %208 = vector.broadcast %207 : vector<1x128xi1> to vector<8x128xi1>
    %209 = arith.select %208, %199, %198 : vector<8x128xi1>, vector<8x128xf32>
    %c9_i32_56 = arith.constant 9 : i32
    %210 = tpu.dynamic_rotate %121 by %c9_i32_56 dim 1 : vector<8x128xf32>, i32 -> vector<8x128xf32>
    %c9_i32_57 = arith.constant 9 : i32
    %211 = vector.broadcast %c9_i32_57 : i32 to vector<1x128xi32>
    %212 = arith.cmpi eq, %3, %211 : vector<1x128xi32>
    %213 = vector.shape_cast %212 : vector<1x128xi1> to vector<1x128xi1>
    %214 = vector.broadcast %213 : vector<1x128xi1> to vector<8x128xi1>
    %215 = arith.select %214, %210, %209 : vector<8x128xi1>, vector<8x128xf32>
    %216 = arith.addf %204, %1 : vector<8x128xf32>
    %c0_58 = arith.constant 0 : index
    %c2 = arith.constant 2 : index
    %c0_59 = arith.constant 0 : index
    %c0_60 = arith.constant 0 : index
    %217 = vector.load %arg5[%c0_58, %c2, %c0_59, %c0_60] : memref<1x4x8x128xf32, #tpu.memory_space<vmem>>, vector<1x1x8x128xf32>
    %218 = vector.shape_cast %217 : vector<1x1x8x128xf32> to vector<8x128xf32>
    %219 = vector.shape_cast %216 : vector<8x128xf32> to vector<1x1x8x128xf32>
    tpu.vector_store %arg5[%c0_58, %c2, %c0_59, %c0_60], %219 {strides = array<i32>} : memref<1x4x8x128xf32, #tpu.memory_space<vmem>>, vector<1x1x8x128xf32>,
    %220 = arith.addf %215, %1 : vector<8x128xf32>
    %c0_61 = arith.constant 0 : index
    %c3 = arith.constant 3 : index
    %c0_62 = arith.constant 0 : index
    %c0_63 = arith.constant 0 : index
    %221 = vector.load %arg5[%c0_61, %c3, %c0_62, %c0_63] : memref<1x4x8x128xf32, #tpu.memory_space<vmem>>, vector<1x1x8x128xf32>
    %222 = vector.shape_cast %221 : vector<1x1x8x128xf32> to vector<8x128xf32>
    %223 = vector.shape_cast %220 : vector<8x128xf32> to vector<1x1x8x128xf32>
    tpu.vector_store %arg5[%c0_61, %c3, %c0_62, %c0_63], %223 {strides = array<i32>} : memref<1x4x8x128xf32, #tpu.memory_space<vmem>>, vector<1x1x8x128xf32>,
    return
  }
  func.func @transform_0(%arg0: i32, %arg1: i32) -> (i32, i32) {
    %c0_i32 = arith.constant 0 : i32
    %c0_i32_0 = arith.constant 0 : i32
    %c0_i32_1 = arith.constant 0 : i32
    return %c0_i32, %c0_i32_0 : i32, i32
  }
  func.func @transform_1(%arg0: i32, %arg1: i32) -> (i32, i32) {
    %c0_i32 = arith.constant 0 : i32
    %c0_i32_0 = arith.constant 0 : i32
    %c0_i32_1 = arith.constant 0 : i32
    return %c0_i32, %c0_i32_0 : i32, i32
  }
  func.func @transform_2(%arg0: i32, %arg1: i32) -> (i32, i32, i32) {
    %c0_i32 = arith.constant 0 : i32
    %c0_i32_0 = arith.constant 0 : i32
    return %arg0, %arg1, %c0_i32 : i32, i32, i32
  }
  func.func @transform_3(%arg0: i32, %arg1: i32) -> (i32, i32, i32, i32) {
    %c0_i32 = arith.constant 0 : i32
    %c0_i32_0 = arith.constant 0 : i32
    %c0_i32_1 = arith.constant 0 : i32
    return %arg0, %c0_i32, %arg1, %c0_i32_0 : i32, i32, i32, i32
  }
}

</mosaic_0001>

<llo_original>
// kernel: tpu_custom_call.1
$region0: #{tpu_custom_call.1}
  #allocation0 [shape = 'u32[]', space=smem, size = 0x4, offset = 0x4, fixed_abs, tag = 'smem constant byte address 0x4 - core index']
  #allocation1 [shape = 'u32[144,128]{1,0:T(1,128)}', space=vmem, size = 0x12000, scoped, tag = 'internal scratch']
  %s0 = inlined_call_operand.hbm [shape: s32[1,128], index: 0, kind: input, shape index: {}]
  %s1 = inlined_call_operand.vmem [shape: s32[1,128], index: 1, kind: input, shape index: {}]
  %s2 = inlined_call_operand.hbm [shape: f32[2,8,128], index: 2, kind: input, shape index: {}]
  %s3 = inlined_call_operand.hbm [shape: f32[2,4,8,128], index: 3, kind: output, shape index: {}]
  %s4 = sld [smem:[#allocation0]]
  $region53: #{tpu_custom_call.1} parent=0
    _
  %s6 = ssub.s32 1, %s4
  %s7 = scalar_select 0, %s6, %s4
  $region1: #{tpu_custom_call.1} parent=0
    #allocation2 [shape = 'u8[512]{0}', space=vmem, size = 0x400, scoped, tag = 'input window, operand 0, single buffered']
    #allocation3 [shape = 's32[2]{0}', space=sflag, size = 0x8, scoped, tag = 'scoped memory for tpu_custom_call.1']
    #allocation4 [shape = 's32[2]{0}', space=sflag, size = 0x8, scoped, tag = 'scoped memory for tpu_custom_call.1']
    #allocation5 [shape = 'u8[8192]{0}', space=vmem, size = 0x2000, scoped, tag = 'input window, operand 2']
    #allocation6 [shape = 's32[2]{0}', space=sflag, size = 0x8, scoped, tag = 'scoped memory for tpu_custom_call.1']
    #allocation7 [shape = 'u8[32768]{0}', space=vmem, size = 0x8000, scoped, tag = 'output window, operand 0']
    %8 = vsyncpa [#allocation3], 0
    %9 = vsyncpa [#allocation6], 0
    %s10 = scalar_lea.sflag [#allocation6], 1
    %11 = vsyncpa %s10, 0
    %12 = vsyncpa [#allocation4], 0
    %s13 = scalar_lea.sflag [#allocation4], 1
    %14 = vsyncpa %s13, 0
    loop: start=0, step=1, limit=4
    $region2: #{tpu_custom_call.1} parent=1 // loop_pre_header
      _
    $region3: #{tpu_custom_call.1} parent=1 // loop_header
      %s16 = sphi 0, %s20
      %p17 = scmp.ge.s32.totalorder %s16, 4
      %s23 = sphi 0, %s35
      %s24 = sphi 0, %s31
      %s25 = sphi 0, %s23
      %s26 = sphi 0, %s24
      %s27 = sphi 0, %s25
      %s28 = sphi 0, %s26
      %s36 = sphi 0, %s36
      %s38 = sphi 0, %s36
      %s39 = sphi 0, %s38
      %s53 = sphi 0, %s39
      %s57 = sphi 0, %s57
      %s59 = sphi 0, %s57
      %s60 = sphi 0, %s59
      %s74 = sphi 0, %s60
      %s82 = sphi 0, %s84
      %s85 = sphi 0, %s82
      %s86 = sphi 0, %s85
      %s102 = sphi 0, %s86
      %s110 = sphi 0, %s112
      %s113 = sphi 0, %s110
      %s114 = sphi 0, %s113
      %s130 = sphi 0, %s114
    $region4: #{tpu_custom_call.1} parent=1 // loop_header_branch
      %19 = sbr.rel (%p17) target = $region8
    $region5: #{tpu_custom_call.1} parent=1 // loop_body
      %s21 = ssub.s32 %s16, 1
      %s22 = ssub.s32 %s16, 2
      %s29 = sadd.s32 1, %s24
      %p30 = scmp.ge.s32.totalorder %s29, 1
      %s31 = scalar_select %p30, 0, %s29
      %s32 = sadd.s32 1, %s23
      %s33 = scalar_select %p30, %s32, %s23
      %p34 = scmp.ge.s32.totalorder %s33, 2
      %s35 = scalar_select %p34, 0, %s33
      %s37 = sadd.s32 %s36, 1
      %p40 = scmp.eq.s32.totalorder %s16, 1
      %p41 = scmp.ne.s32.totalorder %s36, %s38
      %p42 = scmp.eq.s32.totalorder %s16, 0
      %p43 = por %p41, %p42
      %p44 = scmp.ne.s32.totalorder %s36, %s38
      %p45 = scmp.eq.s32.totalorder %s21, 1
      %p46 = por %p44, %p45
      %p47 = scmp.ne.s32.totalorder %s38, %s39
      %p48 = scmp.eq.s32.totalorder %s21, 0
      %p49 = por %p47, %p48
      %p50 = scmp.ne.s32.totalorder %s38, %s39
      %p51 = scmp.eq.s32.totalorder %s22, 1
      %p52 = por %p50, %p51
      %p54 = scmp.ne.s32.totalorder %s39, %s53
      %p55 = scmp.eq.s32.totalorder %s22, 0
      %p56 = por %p54, %p55
      %s58 = sadd.s32 %s57, 1
      %p61 = scmp.eq.s32.totalorder %s16, 1
      %p62 = scmp.ne.s32.totalorder %s57, %s59
      %p63 = scmp.eq.s32.totalorder %s16, 0
      %p64 = por %p62, %p63
      %p65 = scmp.ne.s32.totalorder %s57, %s59
      %p66 = scmp.eq.s32.totalorder %s21, 1
      %p67 = por %p65, %p66
      %p68 = scmp.ne.s32.totalorder %s59, %s60
      %p69 = scmp.eq.s32.totalorder %s21, 0
      %p70 = por %p68, %p69
      %p71 = scmp.ne.s32.totalorder %s59, %s60
      %p72 = scmp.eq.s32.totalorder %s22, 1
      %p73 = por %p71, %p72
      %p75 = scmp.ne.s32.totalorder %s60, %s74
      %p76 = scmp.eq.s32.totalorder %s22, 0
      %p77 = por %p75, %p76
      %s78 = ssub.s32 %s23, %s35
      %s79 = ssub.s32 %s24, %s31
      %s80 = sor.u32 %s78, %s79
      %p81 = scmp.eq.s32.totalorder %s80, 0
      %s83 = sadd.s32 %s82, 1
      %s84 = scalar_select %p81, %s82, %s83
      %p87 = pneg %p81
      %p88 = scmp.eq.s32.totalorder %s16, 1
      %p89 = por %p87, %p88
      %p90 = scmp.ne.s32.totalorder %s82, %s85
      %p91 = scmp.eq.s32.totalorder %s16, 0
      %p92 = por %p90, %p91
      %p93 = scmp.ne.s32.totalorder %s82, %s85
      %p94 = scmp.eq.s32.totalorder %s21, 1
      %p95 = por %p93, %p94
      %p96 = scmp.ne.s32.totalorder %s85, %s86
      %p97 = scmp.eq.s32.totalorder %s21, 0
      %p98 = por %p96, %p97
      %p99 = scmp.ne.s32.totalorder %s85, %s86
      %p100 = scmp.eq.s32.totalorder %s22, 1
      %p101 = por %p99, %p100
      %p103 = scmp.ne.s32.totalorder %s86, %s102
      %p104 = scmp.eq.s32.totalorder %s22, 0
      %p105 = por %p103, %p104
      %s106 = ssub.s32 %s23, %s35
      %s107 = ssub.s32 %s24, %s31
      %s108 = sor.u32 %s106, %s107
      %p109 = scmp.eq.s32.totalorder %s108, 0
      %s111 = sadd.s32 %s110, 1
      %s112 = scalar_select %p109, %s110, %s111
      %p115 = pneg %p109
      %p116 = scmp.eq.s32.totalorder %s16, 1
      %p117 = por %p115, %p116
      %p118 = scmp.ne.s32.totalorder %s110, %s113
      %p119 = scmp.eq.s32.totalorder %s16, 0
      %p120 = por %p118, %p119
      %p121 = scmp.ne.s32.totalorder %s110, %s113
      %p122 = scmp.eq.s32.totalorder %s21, 1
      %p123 = por %p121, %p122
      %p124 = scmp.ne.s32.totalorder %s113, %s114
      %p125 = scmp.eq.s32.totalorder %s21, 0
      %p126 = por %p124, %p125
      %p127 = scmp.ne.s32.totalorder %s113, %s114
      %p128 = scmp.eq.s32.totalorder %s22, 1
      %p129 = por %p127, %p128
      %p131 = scmp.ne.s32.totalorder %s114, %s130
      %p132 = scmp.eq.s32.totalorder %s22, 0
      %p133 = por %p131, %p132
      %p134 = scmp.le.s32.totalorder 1, %s16
      %p135 = scmp.lt.s32.totalorder %s16, 3
      %p136 = pnand %p134, %p135
      %p137 = pneg %p136
      // Predicated region
      $region9: #{tpu_custom_call.1} parent=5 // pred_check
        _
      $region10: #{tpu_custom_call.1} parent=5 // pred_check_branch
        %139 = sbr.rel (%p136) target = $region12
      $region11: #{tpu_custom_call.1} parent=5 // pred_region
        %s140 = ssub.s32 %s16, 1
        // Predicated region
        $region13: #{tpu_custom_call.1} parent=11 // pred_check
          %p141 = pneg %p49
        $region14: #{tpu_custom_call.1} parent=11 // pred_check_branch
          %143 = sbr.rel (%p141) target = $region16
        $region15: #{tpu_custom_call.1} parent=11 // pred_region
          %s145 = ssub.s32 16, 16
          %146 = vsyncadd [#allocation3], %s145
          %s148 = sshll.u32 [#allocation2], 4
          %s149 = int_to_ptr.vmem [resolvable:$true] %s148
          %151 = dma.hbm_to_vmem [thread:$0]  %s0, 16, %s149, [#allocation3]
        $region16: #{tpu_custom_call.1} parent=11 // pred_fallthru
          _
        // Predicated region
        $region17: #{tpu_custom_call.1} parent=11 // pred_check
          %p152 = pneg %p70
        $region18: #{tpu_custom_call.1} parent=11 // pred_check_branch
          %154 = sbr.rel (%p152) target = $region20
        $region19: #{tpu_custom_call.1} parent=11 // pred_region
          _
        $region20: #{tpu_custom_call.1} parent=11 // pred_fallthru
          _
      $region12: #{tpu_custom_call.1} parent=5 // pred_fallthru
        _
      %p155 = scmp.lt.s32.totalorder %s16, 2
      // Predicated region
      $region21: #{tpu_custom_call.1} parent=5 // pred_check
        %p156 = pneg %p155
      $region22: #{tpu_custom_call.1} parent=5 // pred_check_branch
        %158 = sbr.rel (%p156) target = $region24
      $region23: #{tpu_custom_call.1} parent=5 // pred_region
        // Predicated region
        $region25: #{tpu_custom_call.1} parent=23 // pred_check
          %p159 = pneg %p92
        $region26: #{tpu_custom_call.1} parent=23 // pred_check_branch
          %161 = sbr.rel (%p159) target = $region28
        $region27: #{tpu_custom_call.1} parent=23 // pred_region
          %s162 = sand.u32 %s82, 1
          %s163 = scalar_lea.sflag [#allocation6], %s162
          %s164 = sand.u32 %s82, 1
          %s165 = smul.addr %s164, 8
          %s166 = scalar_lea.vmem [#allocation5], %s165
          %s168 = ssub.s32 128, 128
          %169 = vsyncadd %s163, %s168
          %s170 = sadd.s32 %s24, %s23
          %s171 = smul.addr %s170, 128
          %s172 = scalar_lea.hbm %s2, %s171
          %s174 = sshll.u32 %s166, 4
          %s175 = int_to_ptr.vmem [resolvable:$true] %s174
          %177 = dma.hbm_to_vmem [thread:$0]  %s172, 128, %s175, %s163
        $region28: #{tpu_custom_call.1} parent=23 // pred_fallthru
          _
      $region24: #{tpu_custom_call.1} parent=5 // pred_fallthru
        _
      %p178 = scmp.le.s32.totalorder 1, %s16
      %p179 = scmp.lt.s32.totalorder %s16, 3
      %p180 = pnand %p178, %p179
      %p181 = pneg %p180
      // Predicated region
      $region29: #{tpu_custom_call.1} parent=5 // pred_check
        _
      $region30: #{tpu_custom_call.1} parent=5 // pred_check_branch
        %183 = sbr.rel (%p180) target = $region32
      $region31: #{tpu_custom_call.1} parent=5 // pred_region
        %s184 = ssub.s32 %s16, 1
        // Predicated region
        $region33: #{tpu_custom_call.1} parent=31 // pred_check
          %p185 = pneg %p49
        $region34: #{tpu_custom_call.1} parent=31 // pred_check_branch
          %187 = sbr.rel (%p185) target = $region36
        $region35: #{tpu_custom_call.1} parent=31 // pred_region
          %188 = dma.done [#allocation3], 16
        $region36: #{tpu_custom_call.1} parent=31 // pred_fallthru
          _
        %s189 = sand.u32 %s85, 1
        %s190 = scalar_lea.sflag [#allocation6], %s189
        %s191 = sand.u32 %s85, 1
        %s192 = smul.addr %s191, 8
        %s193 = scalar_lea.vmem [#allocation5], %s192
        // Predicated region
        $region37: #{tpu_custom_call.1} parent=31 // pred_check
          %p194 = pneg %p98
        $region38: #{tpu_custom_call.1} parent=31 // pred_check_branch
          %196 = sbr.rel (%p194) target = $region40
        $region39: #{tpu_custom_call.1} parent=31 // pred_region
          %197 = dma.done %s190, 128
        $region40: #{tpu_custom_call.1} parent=31 // pred_fallthru
          _
        %p198 = pneg %p49
        %p199 = pneg %p46
        %p200 = pneg %p70
        %p201 = pneg %p67
        %s202 = sand.u32 %s85, 1
        %s203 = scalar_lea.sflag [#allocation6], %s202
        %s204 = sand.u32 %s85, 1
        %s205 = smul.addr %s204, 8
        %s206 = scalar_lea.vmem [#allocation5], %s205
        %p207 = pneg %p98
        %p208 = pneg %p95
        %p209 = pneg %p126
        %p210 = pneg %p123
        %s211 = sand.u32 %s113, 1
        %s212 = scalar_lea.sflag [#allocation4], %s211
        %s213 = sand.u32 %s113, 1
        %s214 = smul.addr %s213, 32
        %s215 = scalar_lea.vmem [#allocation7], %s214
        %v216 = vld [vmem:[%s193] sm:$0xff]
        %v217 = vld [vmem:[#allocation2] sm:$0x1]
        %v218 = vld [vmem:[%s1] sm:$0x1]
        %219 = vrot.lane.b32.xlu0 %v216, 127
        %v220 = vpop.permute.xlu0 %219
        %221 = vrot.lane.b32.xlu0 %v216, 120
        %v222 = vpop.permute.xlu0 %221
        %v223 = vadd.f32 %v216, %v220
        %224 = vrot.lane.b32.xlu0 %v223, 126
        %v225 = vpop.permute.xlu0 %224
        %v226 = vadd.f32 %v223, %v225
        %227 = vrot.lane.b32.xlu0 %v226, 124
        %v228 = vpop.permute.xlu0 %227
        %v229 = vadd.f32 %v226, %v228
        %v230 = vadd.f32 %v229, %v222
        %v231 = vmul.f32 %v230, 0.11111111
        %232 = vrot.lane.b32.xlu0 %v231, 1
        %v233 = vpop.permute.xlu0 %232
        %vm234 = vcmp.eq.s32.totalorder %v217, 1
        %v235 = vsel %vm234, 1, 0
        %v236 = vlaneseq
        %v237 = vshrl.u32 %v236, 7
        %v238 = vsub.s32 0, %v237
        %v239 = vrot.slane %v235, %v238
        %vm240 = vcmp.eq.s32.totalorder %v239, 1
        %v241 = vsel %vm240, %v233, %v231
        %vm242 = vcmp.eq.s32.totalorder %v218, 1
        %v243 = vsel %vm242, 1, 0
        %v244 = vlaneseq
        %v245 = vshrl.u32 %v244, 7
        %v246 = vsub.s32 0, %v245
        %v247 = vrot.slane %v243, %v246
        %vm248 = vcmp.eq.s32.totalorder %v247, 1
        %v249 = vsel %vm248, %v233, %v231
        %250 = vrot.lane.b32.xlu0 %v231, 2
        %v251 = vpop.permute.xlu0 %250
        %vm252 = vcmp.eq.s32.totalorder %v217, 2
        %v253 = vsel %vm252, 1, 0
        %v254 = vlaneseq
        %v255 = vshrl.u32 %v254, 7
        %v256 = vsub.s32 0, %v255
        %v257 = vrot.slane %v253, %v256
        %vm258 = vcmp.eq.s32.totalorder %v257, 1
        %v259 = vsel %vm258, %v251, %v241
        %vm260 = vcmp.eq.s32.totalorder %v218, 2
        %v261 = vsel %vm260, 1, 0
        %v262 = vlaneseq
        %v263 = vshrl.u32 %v262, 7
        %v264 = vsub.s32 0, %v263
        %v265 = vrot.slane %v261, %v264
        %vm266 = vcmp.eq.s32.totalorder %v265, 1
        %v267 = vsel %vm266, %v251, %v249
        %268 = vrot.lane.b32.xlu0 %v231, 3
        %v269 = vpop.permute.xlu0 %268
        %vm270 = vcmp.eq.s32.totalorder %v217, 3
        %v271 = vsel %vm270, 1, 0
        %v272 = vlaneseq
        %v273 = vshrl.u32 %v272, 7
        %v274 = vsub.s32 0, %v273
        %v275 = vrot.slane %v271, %v274
        %vm276 = vcmp.eq.s32.totalorder %v275, 1
        %v277 = vsel %vm276, %v269, %v259
        %vm278 = vcmp.eq.s32.totalorder %v218, 3
        %v279 = vsel %vm278, 1, 0
        %v280 = vlaneseq
        %v281 = vshrl.u32 %v280, 7
        %v282 = vsub.s32 0, %v281
        %v283 = vrot.slane %v279, %v282
        %vm284 = vcmp.eq.s32.totalorder %v283, 1
        %v285 = vsel %vm284, %v269, %v267
        %286 = vrot.lane.b32.xlu0 %v231, 4
        %v287 = vpop.permute.xlu0 %286
        %vm288 = vcmp.eq.s32.totalorder %v217, 4
        %v289 = vsel %vm288, 1, 0
        %v290 = vlaneseq
        %v291 = vshrl.u32 %v290, 7
        %v292 = vsub.s32 0, %v291
        %v293 = vrot.slane %v289, %v292
        %vm294 = vcmp.eq.s32.totalorder %v293, 1
        %v295 = vsel %vm294, %v287, %v277
        %vm296 = vcmp.eq.s32.totalorder %v218, 4
        %v297 = vsel %vm296, 1, 0
        %v298 = vlaneseq
        %v299 = vshrl.u32 %v298, 7
        %v300 = vsub.s32 0, %v299
        %v301 = vrot.slane %v297, %v300
        %vm302 = vcmp.eq.s32.totalorder %v301, 1
        %v303 = vsel %vm302, %v287, %v285
        %304 = vrot.lane.b32.xlu0 %v231, 5
        %v305 = vpop.permute.xlu0 %304
        %vm306 = vcmp.eq.s32.totalorder %v217, 5
        %v307 = vsel %vm306, 1, 0
        %v308 = vlaneseq
        %v309 = vshrl.u32 %v308, 7
        %v310 = vsub.s32 0, %v309
        %v311 = vrot.slane %v307, %v310
        %vm312 = vcmp.eq.s32.totalorder %v311, 1
        %v313 = vsel %vm312, %v305, %v295
        %vm314 = vcmp.eq.s32.totalorder %v218, 5
        %v315 = vsel %vm314, 1, 0
        %v316 = vlaneseq
        %v317 = vshrl.u32 %v316, 7
        %v318 = vsub.s32 0, %v317
        %v319 = vrot.slane %v315, %v318
        %vm320 = vcmp.eq.s32.totalorder %v319, 1
        %v321 = vsel %vm320, %v305, %v303
        %322 = vrot.lane.b32.xlu0 %v231, 6
        %v323 = vpop.permute.xlu0 %322
        %vm324 = vcmp.eq.s32.totalorder %v217, 6
        %v325 = vsel %vm324, 1, 0
        %v326 = vlaneseq
        %v327 = vshrl.u32 %v326, 7
        %v328 = vsub.s32 0, %v327
        %v329 = vrot.slane %v325, %v328
        %vm330 = vcmp.eq.s32.totalorder %v329, 1
        %v331 = vsel %vm330, %v323, %v313
        %vm332 = vcmp.eq.s32.totalorder %v218, 6
        %v333 = vsel %vm332, 1, 0
        %v334 = vlaneseq
        %v335 = vshrl.u32 %v334, 7
        %v336 = vsub.s32 0, %v335
        %v337 = vrot.slane %v333, %v336
        %vm338 = vcmp.eq.s32.totalorder %v337, 1
        %v339 = vsel %vm338, %v323, %v321
        %340 = vrot.lane.b32.xlu0 %v231, 7
        %v341 = vpop.permute.xlu0 %340
        %vm342 = vcmp.eq.s32.totalorder %v217, 7
        %v343 = vsel %vm342, 1, 0
        %v344 = vlaneseq
        %v345 = vshrl.u32 %v344, 7
        %v346 = vsub.s32 0, %v345
        %v347 = vrot.slane %v343, %v346
        %vm348 = vcmp.eq.s32.totalorder %v347, 1
        %v349 = vsel %vm348, %v341, %v331
        %vm350 = vcmp.eq.s32.totalorder %v218, 7
        %v351 = vsel %vm350, 1, 0
        %v352 = vlaneseq
        %v353 = vshrl.u32 %v352, 7
        %v354 = vsub.s32 0, %v353
        %v355 = vrot.slane %v351, %v354
        %vm356 = vcmp.eq.s32.totalorder %v355, 1
        %v357 = vsel %vm356, %v341, %v339
        %358 = vrot.lane.b32.xlu0 %v231, 8
        %v359 = vpop.permute.xlu0 %358
        %vm360 = vcmp.eq.s32.totalorder %v217, 8
        %v361 = vsel %vm360, 1, 0
        %v362 = vlaneseq
        %v363 = vshrl.u32 %v362, 7
        %v364 = vsub.s32 0, %v363
        %v365 = vrot.slane %v361, %v364
        %vm366 = vcmp.eq.s32.totalorder %v365, 1
        %v367 = vsel %vm366, %v359, %v349
        %vm368 = vcmp.eq.s32.totalorder %v218, 8
        %v369 = vsel %vm368, 1, 0
        %v370 = vlaneseq
        %v371 = vshrl.u32 %v370, 7
        %v372 = vsub.s32 0, %v371
        %v373 = vrot.slane %v369, %v372
        %vm374 = vcmp.eq.s32.totalorder %v373, 1
        %v375 = vsel %vm374, %v359, %v357
        %376 = vrot.lane.b32.xlu0 %v231, 9
        %v377 = vpop.permute.xlu0 %376
        %vm378 = vcmp.eq.s32.totalorder %v218, 9
        %v379 = vsel %vm378, 1, 0
        %v380 = vlaneseq
        %v381 = vshrl.u32 %v380, 7
        %v382 = vsub.s32 0, %v381
        %v383 = vrot.slane %v379, %v382
        %vm384 = vcmp.eq.s32.totalorder %v383, 1
        %v385 = vsel %vm384, %v377, %v375
        %v386 = vadd.f32 %v367, %v216
        %387 = vst [vmem:[%s215] sm:$0xff] %v386
        %v388 = vadd.f32 %v385, %v216
        %s389 = scalar_lea.vmem %s215, 8 [#allocation7]
        %390 = vst [vmem:[%s389] sm:$0xff] %v388
        %v391 = vmax.f32 %v216, %v220
        %392 = vrot.lane.b32.xlu0 %v391, 126
        %v393 = vpop.permute.xlu0 %392
        %v394 = vmax.f32 %v391, %v393
        %395 = vrot.lane.b32.xlu0 %v394, 124
        %v396 = vpop.permute.xlu0 %395
        %v397 = vmax.f32 %v394, %v396
        %v398 = vmax.f32 %v397, %v222
        %399 = vrot.lane.b32.xlu0 %v398, 1
        %v400 = vpop.permute.xlu0 %399
        %v401 = vsel %vm240, %v400, %v398
        %v402 = vsel %vm248, %v400, %v398
        %403 = vrot.lane.b32.xlu0 %v398, 2
        %v404 = vpop.permute.xlu0 %403
        %v405 = vsel %vm258, %v404, %v401
        %v406 = vsel %vm266, %v404, %v402
        %407 = vrot.lane.b32.xlu0 %v398, 3
        %v408 = vpop.permute.xlu0 %407
        %v409 = vsel %vm276, %v408, %v405
        %v410 = vsel %vm284, %v408, %v406
        %411 = vrot.lane.b32.xlu0 %v398, 4
        %v412 = vpop.permute.xlu0 %411
        %v413 = vsel %vm294, %v412, %v409
        %v414 = vsel %vm302, %v412, %v410
        %415 = vrot.lane.b32.xlu0 %v398, 5
        %v416 = vpop.permute.xlu0 %415
        %v417 = vsel %vm312, %v416, %v413
        %v418 = vsel %vm320, %v416, %v414
        %419 = vrot.lane.b32.xlu0 %v398, 6
        %v420 = vpop.permute.xlu0 %419
        %v421 = vsel %vm330, %v420, %v417
        %v422 = vsel %vm338, %v420, %v418
        %423 = vrot.lane.b32.xlu0 %v398, 7
        %v424 = vpop.permute.xlu0 %423
        %v425 = vsel %vm348, %v424, %v421
        %v426 = vsel %vm356, %v424, %v422
        %427 = vrot.lane.b32.xlu0 %v398, 8
        %v428 = vpop.permute.xlu0 %427
        %v429 = vsel %vm366, %v428, %v425
        %v430 = vsel %vm374, %v428, %v426
        %431 = vrot.lane.b32.xlu0 %v398, 9
        %v432 = vpop.permute.xlu0 %431
        %v433 = vsel %vm384, %v432, %v430
        %v434 = vadd.f32 %v429, %v216
        %s435 = scalar_lea.vmem %s215, 16 [#allocation7]
        %436 = vst [vmem:[%s435] sm:$0xff] %v434
        %v437 = vadd.f32 %v433, %v216
        %s438 = scalar_lea.vmem %s215, 24 [#allocation7]
        %439 = vst [vmem:[%s438] sm:$0xff] %v437
        %s440 = sand.u32 %s113, 1
        %s441 = scalar_lea.sflag [#allocation4], %s440
        %s442 = sand.u32 %s113, 1
        %s443 = smul.addr %s442, 32
        %s444 = scalar_lea.vmem [#allocation7], %s443
        // Predicated region
        $region41: #{tpu_custom_call.1} parent=31 // pred_check
          %p445 = pneg %p123
        $region42: #{tpu_custom_call.1} parent=31 // pred_check_branch
          %447 = sbr.rel (%p445) target = $region44
        $region43: #{tpu_custom_call.1} parent=31 // pred_region
          %s449 = ssub.s32 512, 512
          %450 = vsyncadd %s441, %s449
          %s451 = smul.addr %s25, 4
          %s452 = sadd.s32 %s26, %s451
          %s453 = smul.addr %s452, 128
          %s454 = scalar_lea.hbm %s3, %s453
          %s455 = sshll.u32 %s444, 4
          %s456 = int_to_ptr.vmem [resolvable:$true] %s455
          %461 = dma.vmem_to_hbm [thread:$0]  %s456, 512, %s454, %s441, 128, 128, 8
        $region44: #{tpu_custom_call.1} parent=31 // pred_fallthru
          _
      $region32: #{tpu_custom_call.1} parent=5 // pred_fallthru
        _
      %p462 = scmp.le.s32.totalorder 2, %s16
      // Predicated region
      $region45: #{tpu_custom_call.1} parent=5 // pred_check
        %p463 = pneg %p462
      $region46: #{tpu_custom_call.1} parent=5 // pred_check_branch
        %465 = sbr.rel (%p463) target = $region48
      $region47: #{tpu_custom_call.1} parent=5 // pred_region
        %s466 = ssub.s32 %s16, 2
        // Predicated region
        $region49: #{tpu_custom_call.1} parent=47 // pred_check
          %p467 = pneg %p129
        $region50: #{tpu_custom_call.1} parent=47 // pred_check_branch
          %469 = sbr.rel (%p467) target = $region52
        $region51: #{tpu_custom_call.1} parent=47 // pred_region
          %s470 = sand.u32 %s114, 1
          %s471 = scalar_lea.sflag [#allocation4], %s470
          %s472 = sand.u32 %s114, 1
          %s473 = smul.addr %s472, 32
          %s474 = scalar_lea.vmem [#allocation7], %s473
          %475 = dma.done %s471, 512
        $region52: #{tpu_custom_call.1} parent=47 // pred_fallthru
          _
      $region48: #{tpu_custom_call.1} parent=5 // pred_fallthru
        _
    $region6: #{tpu_custom_call.1} parent=1 // loop_footer
      %s20 = sadd.s32 1, %s16
    $region7: #{tpu_custom_call.1} parent=1 // loop_footer_branch
      %15 = sbr.rel target = $region3
    $region8: #{tpu_custom_call.1} parent=1 // loop_exit
      _
    %476 = vsyncpa [#allocation3], 1
    %s477 = scalar_lea.sflag [#allocation3], 1
    %478 = vsyncpa %s477, 1
    %479 = vsyncpa [#allocation6], 1
    %s480 = scalar_lea.sflag [#allocation6], 1
    %481 = vsyncpa %s480, 1
    %482 = vsyncpa [#allocation4], 1
    %s483 = scalar_lea.sflag [#allocation4], 1
    %484 = vsyncpa %s483, 1

</llo_original>
